<compile_context>
chip_gen: v5e
topology: v5e:2x2
jax: 0.10.0
libtpu: 0.0.40
codegen_flags: <defaults>
</compile_context>

<pallas_src>
import functools
import math

import jax
import jax.numpy as jnp
from jax.experimental import pallas as pl
from jax.experimental.pallas import tpu as pltpu

EPS = 1e-12                      # module's LayerNorm default eps
GELU_C = math.sqrt(2.0 / math.pi)


def _vmem_limit_bytes():
    try:
        kind = jax.devices()[0].device_kind.lower()
    except Exception:
        return 48 * 1024 * 1024
    if any(g in kind for g in ("v4", "v5", "v6")):
        return 100 * 1024 * 1024     # 128 MiB physical -> leave headroom
    return 48 * 1024 * 1024          # v7x (64 MiB physical) / unknown


def _layernorm(x, w, b):
    mean = jnp.mean(x, axis=-1, keepdims=True)
    var = jnp.mean((x - mean) ** 2, axis=-1, keepdims=True)   # unbiased=False
    return (x - mean) * jax.lax.rsqrt(var + EPS) * w + b


def _gelu_new(x):
    # 0.5 * x * (1 + tanh(sqrt(2/pi) * (x + 0.044715 x^3)))
    return 0.5 * x * (1.0 + jnp.tanh(GELU_C * (x + 0.044715 * x * x * x)))


# -------------------- kernel A: LN1 + fused QKV projection --------------------
def ln_qkv_kernel(x_ref, wqkv_ref, bqkv_ref, vec_ref, qkv_ref, ln1_s):
    c = pl.program_id(1)

    @pl.when(c == 0)
    def _():
        ln1 = _layernorm(x_ref[...], vec_ref[0:1, :], vec_ref[1:2, :])
        ln1_s[...] = ln1.astype(jnp.bfloat16)

    y = jnp.dot(ln1_s[...], wqkv_ref[...],
                preferred_element_type=jnp.float32) + bqkv_ref[...]
    qkv_ref[...] = y.astype(qkv_ref.dtype)


# --------------- kernel B: per-(batch, head) attention core -------------------
def attn_core_kernel(q_ref, k_ref, v_ref, ctx_ref):
    # 1/sqrt(dh) already folded into the q projection weights.
    s = jnp.einsum("qd,kd->qk", q_ref[...], k_ref[...],
                   preferred_element_type=jnp.float32)
    s = s - jnp.max(s, axis=-1, keepdims=True)
    p = jnp.exp(s)
    p = p / jnp.sum(p, axis=-1, keepdims=True)          # exact f32 denom
    ctx = jnp.einsum("qk,kd->qd", p.astype(jnp.bfloat16), v_ref[...],
                     preferred_element_type=jnp.float32)
    ctx_ref[...] = ctx.astype(ctx_ref.dtype)


# ------------- kernel C: output projection + residual + LN2 + FFN -------------
def outproj_ffn_kernel(x_ref, ctx_ref, wo_ref, w1_ref, b1_ref, w2_ref, vec_ref,
                       out_ref, x1_s, ln2_s, acc_s):
    i = pl.program_id(1)

    @pl.when(i == 0)
    def _init():
        # x1 = x + ctx @ Wo + bo   (head reduction happens inside this dot)
        x1 = (x_ref[...]
              + jnp.dot(ctx_ref[...], wo_ref[...],
                        preferred_element_type=jnp.float32)
              + vec_ref[2:3, :])
        x1_s[...] = x1
        ln2_s[...] = _layernorm(x1, vec_ref[0:1, :], vec_ref[1:2, :]
                                ).astype(jnp.bfloat16)
        acc_s[...] = jnp.zeros_like(acc_s)

    # One I-chunk of the FFN; accumulate its contribution to the output.
    h = jnp.dot(ln2_s[...], w1_ref[...],
                preferred_element_type=jnp.float32) + b1_ref[...]
    h = _gelu_new(h)                      # f32 (v5e-safe); see TODO for bf16
    acc_s[...] += jnp.dot(h.astype(jnp.bfloat16), w2_ref[...],
                          preferred_element_type=jnp.float32)

    @pl.when(i == pl.num_programs(1) - 1)
    def _fin():
        out_ref[...] = x1_s[...] + acc_s[...] + vec_ref[3:4, :]   # residual + b2


# ---------------------------------- wrapper -----------------------------------
def _pick_row_tile(rows, hidden, vmem_limit):
    # Arithmetic intensity of the FFN weight stream ~ tile_r flops/byte, so
    # prefer big row tiles; require >= 4 tiles when possible (2 per v7x core).
    budget = int(0.4 * vmem_limit)
    per_row = 32 * hidden                # rough f32/bf16 blocks + scratch bytes
    for min_tiles in (4, 2, 1):
        for t in (1024, 768, 512, 384, 256, 128, 64, 32, 16):
            if rows % t == 0 and rows // t >= min_tiles and t * per_row <= budget:
                return t
    return rows


def _pick_col_tile(cols):
    for t in (1024, 768, 512, 384, 256, 128):
        if cols % t == 0:
            return t
    return cols


def transformer_layer(x, params, *, num_heads):
    """x: (B, S, H) f32.  params: dict of weight arrays (see init in __main__)."""
    B, S, H = x.shape
    I = params["w1"].shape[1]
    assert H % num_heads == 0
    dh = H // num_heads
    R = B * S
    bf16, f32 = jnp.bfloat16, jnp.float32

    vmem_limit = _vmem_limit_bytes()

    def cparams(sem):
        return pltpu.CompilerParams(dimension_semantics=sem,
                                    vmem_limit_bytes=vmem_limit)

    # --- weight prep (plain JAX, outside the kernels): fused QKV, scale baked
    #     into q columns, lane-dense bias / LN packs, bf16 MXU operands.
    scale = 1.0 / math.sqrt(dh)
    wqkv = jnp.concatenate([params["wq"] * scale, params["wk"], params["wv"]],
                           axis=1).astype(bf16)                       # (H, 3H)
    bqkv = jnp.concatenate([params["bq"] * scale, params["bk"], params["bv"]],
                           axis=1).astype(f32)                        # (1, 3H)
    vecs_a = jnp.stack([params["ln1_w"][0], params["ln1_b"][0]], 0).astype(f32)
    vecs_c = jnp.stack([params["ln2_w"][0], params["ln2_b"][0],
                        params["bo"][0], params["b2"][0]], 0).astype(f32)
    wo_b = params["wo"].astype(bf16)
    w1_b = params["w1"].astype(bf16)
    w2_b = params["w2"].astype(bf16)
    b1 = params["b1"].astype(f32)

    rows = x.reshape(R, H)
    tile_r = _pick_row_tile(R, H, vmem_limit)
    tile_n = _pick_col_tile(3 * H)
    tile_i = _pick_col_tile(I)

    # ---------------- kernel A: qkv = LN1(x) @ Wqkv + bqkv ----------------
    cost_a = pl.CostEstimate(
        flops=int(2 * R * H * 3 * H),
        transcendentals=int(R),
        bytes_accessed=int(4 * R * H + 2 * H * 3 * H + 2 * R * 3 * H),
    )
    qkv_rows = pl.pallas_call(
        ln_qkv_kernel,
        out_shape=jax.ShapeDtypeStruct((R, 3 * H), bf16),
        grid_spec=pltpu.PrefetchScalarGridSpec(
            num_scalar_prefetch=0,
            grid=(R // tile_r, (3 * H) // tile_n),
            in_specs=[
                pl.BlockSpec((tile_r, H), lambda r, c: (r, 0)),
                pl.BlockSpec((H, tile_n), lambda r, c: (0, c)),
                pl.BlockSpec((1, tile_n), lambda r, c: (0, c)),
                pl.BlockSpec((2, H), lambda r, c: (0, 0)),
            ],
            out_specs=pl.BlockSpec((tile_r, tile_n), lambda r, c: (r, c)),
            scratch_shapes=[pltpu.VMEM((tile_r, H), bf16)],   # cached LN1
        ),
        compiler_params=cparams(("parallel", "arbitrary")),
        cost_estimate=cost_a,
    )(rows, wqkv, bqkv, vecs_a)

    # Head split is wrapper-side layout plumbing (no in-kernel reshapes).
    qkv = qkv_rows.reshape(B, S, 3 * H)

    def split_heads(t):                              # (B,S,H) -> (B,NH,S,dh)
        return t.reshape(B, S, num_heads, dh).transpose(0, 2, 1, 3)

    q = split_heads(qkv[..., 0 * H:1 * H])
    k = split_heads(qkv[..., 1 * H:2 * H])
    v = split_heads(qkv[..., 2 * H:3 * H])

    # ---------------- kernel B: ctx = softmax(q k^T) v per (b, h) ----------------
    cost_b = pl.CostEstimate(
        flops=int(4 * B * num_heads * S * S * dh),
        transcendentals=int(B * num_heads * S * S),
        bytes_accessed=int(4 * 2 * B * num_heads * S * dh),
    )
    head_spec = pl.BlockSpec((None, None, S, dh), lambda b, h: (b, h, 0, 0))
    ctx = pl.pallas_call(
        attn_core_kernel,
        out_shape=jax.ShapeDtypeStruct((B, num_heads, S, dh), bf16),
        grid_spec=pltpu.PrefetchScalarGridSpec(
            num_scalar_prefetch=0,
            grid=(B, num_heads),
            in_specs=[head_spec, head_spec, head_spec],
            out_specs=head_spec,
        ),
        compiler_params=cparams(("parallel", "parallel")),
        cost_estimate=cost_b,
    )(q, k, v)

    ctx_rows = ctx.transpose(0, 2, 1, 3).reshape(R, H)   # lane-dense (rows, H)

    # ---------- kernel C: out = x1 + FFN(LN2(x1)), x1 = x + ctx @ Wo + bo ----------
    cost_c = pl.CostEstimate(
        flops=int(2 * R * H * H + 4 * R * H * I),
        transcendentals=int(R * I),
        bytes_accessed=int(3 * 4 * R * H + 2 * R * H + 2 * H * H + 4 * H * I),
    )
    out_rows = pl.pallas_call(
        outproj_ffn_kernel,
        out_shape=jax.ShapeDtypeStruct((R, H), f32),
        grid_spec=pltpu.PrefetchScalarGridSpec(
            num_scalar_prefetch=0,
            grid=(R // tile_r, I // tile_i),
            in_specs=[
                pl.BlockSpec((tile_r, H), lambda r, i: (r, 0)),   # x rows
                pl.BlockSpec((tile_r, H), lambda r, i: (r, 0)),   # ctx rows
                pl.BlockSpec((H, H), lambda r, i: (0, 0)),        # Wo
                pl.BlockSpec((H, tile_i), lambda r, i: (0, i)),   # W1 chunk
                pl.BlockSpec((1, tile_i), lambda r, i: (0, i)),   # b1 chunk
                pl.BlockSpec((tile_i, H), lambda r, i: (i, 0)),   # W2 chunk
                pl.BlockSpec((4, H), lambda r, i: (0, 0)),        # ln2_w/b, bo, b2
            ],
            out_specs=pl.BlockSpec((tile_r, H), lambda r, i: (r, 0)),
            scratch_shapes=[
                pltpu.VMEM((tile_r, H), f32),    # x1 (kept f32 for residual accuracy)
                pltpu.VMEM((tile_r, H), bf16),   # cached LN2 (bf16 MXU lhs)
                pltpu.VMEM((tile_r, H), f32),    # FFN accumulator
            ],
        ),
        compiler_params=cparams(("parallel", "arbitrary")),
        cost_estimate=cost_c,
    )(rows, ctx_rows, wo_b, w1_b, b1, w2_b, vecs_c)

    return out_rows.reshape(B, S, H)


# ---------------------------- pure-JAX reference ------------------------------
def transformer_layer_ref(x, p, *, num_heads):
    B, S, H = x.shape
    dh = H // num_heads

    def ln(v, w, b):
        m = jnp.mean(v, -1, keepdims=True)
        var = jnp.mean((v - m) ** 2, -1, keepdims=True)
        return (v - m) / jnp.sqrt(var + EPS) * w[0] + b[0]

    ln1 = ln(x, p["ln1_w"], p["ln1_b"])
    q = ln1 @ p["wq"] + p["bq"][0]
    k = ln1 @ p["wk"] + p["bk"][0]
    v = ln1 @ p["wv"] + p["bv"][0]
    q = q.reshape(B, S, num_heads, dh).transpose(0, 2, 1, 3)
    k = k.reshape(B, S, num_heads, dh).transpose(0, 2, 1, 3)
    v = v.reshape(B, S, num_heads, dh).transpose(0, 2, 1, 3)
    scores = jnp.einsum("bhqd,bhkd->bhqk", q, k) / math.sqrt(dh)
    attn = jax.nn.softmax(scores, axis=-1)
    ctx = jnp.einsum("bhqk,bhkd->bhqd", attn, v)
    ctx = ctx.transpose(0, 2, 1, 3).reshape(B, S, H)
    x1 = x + (ctx @ p["wo"] + p["bo"][0])
    ln2 = ln(x1, p["ln2_w"], p["ln2_b"])
    h1 = ln2 @ p["w1"] + p["b1"][0]
    h1 = 0.5 * h1 * (1.0 + jnp.tanh(GELU_C * (h1 + 0.044715 * h1 ** 3)))
    return x1 + (h1 @ p["w2"] + p["b2"][0])


if __name__ == "__main__":
    # Small but lane-dense shapes (H multiple of 128) so the kernel blocks are
    # representative of real layouts.
    B, S, H, I, NH = 2, 64, 128, 256, 4
    init_range = 0.02

    key = jax.random.PRNGKey(0)
    keys = jax.random.split(key, 8)

    params = {
        "wq": init_range * jax.random.normal(keys[0], (H, H), jnp.float32),
        "wk": init_range * jax.random.normal(keys[1], (H, H), jnp.float32),
        "wv": init_range * jax.random.normal(keys[2], (H, H), jnp.float32),
        "wo": init_range * jax.random.normal(keys[3], (H, H), jnp.float32),
        "bq": jnp.zeros((1, H), jnp.float32),
        "bk": jnp.zeros((1, H), jnp.float32),
        "bv": jnp.zeros((1, H), jnp.float32),
        "bo": jnp.zeros((1, H), jnp.float32),
        "w1": init_range * jax.random.normal(keys[4], (H, I), jnp.float32),
        "b1": jnp.zeros((1, I), jnp.float32),
        "w2": init_range * jax.random.normal(keys[5], (I, H), jnp.float32),
        "b2": jnp.zeros((1, H), jnp.float32),
        "ln1_w": jnp.ones((1, H), jnp.float32),
        "ln1_b": jnp.zeros((1, H), jnp.float32),
        "ln2_w": jnp.ones((1, H), jnp.float32),
        "ln2_b": jnp.zeros((1, H), jnp.float32),
    }

    x = jax.random.normal(keys[6], (B, S, H), jnp.float32)

    out = transformer_layer(x, params, num_heads=NH)
    out = jax.block_until_ready(out)

    ref = transformer_layer_ref(x, params, num_heads=NH)
    assert out.shape == (B, S, H)
    # bf16 MXU operands + bf16 inter-kernel activations (residual path stays f32),
    # f32 accumulation and exact softmax denom -> comfortably within 1e-2.
    assert jnp.allclose(out, ref, atol=1e-2, rtol=1e-2), "mismatch vs JAX reference"

    print("KERNEL_OK")
</pallas_src>

<mosaic_0001>
module attributes {stable_mosaic.version = 11 : i64} {
  func.func @ln_qkv_kernel(%arg0: i32, %arg1: i32, %arg2: memref<32x128xf32, #tpu.memory_space<vmem>>, %arg3: memref<128x384xbf16, #tpu.memory_space<vmem>>, %arg4: memref<1x384xf32, #tpu.memory_space<vmem>>, %arg5: memref<2x128xf32, #tpu.memory_space<vmem>>, %arg6: memref<32x384xbf16, #tpu.memory_space<vmem>>, %arg7: memref<32x128xbf16, #tpu.memory_space<vmem>>) attributes {dimension_semantics = [#tpu.dimension_semantics<parallel>, #tpu.dimension_semantics<arbitrary>], iteration_bounds = array<i64: 4, 1>, scalar_prefetch = 0 : i64, scratch_operands = 1 : i64, tpu.core_type = #tpu.core_type<tc>, window_params = [{transform_indices = @transform_0, window_bounds = array<i64: 32, 128>}, {transform_indices = @transform_1, window_bounds = array<i64: 128, 384>}, {transform_indices = @transform_2, window_bounds = array<i64: 1, 384>}, {pipeline_mode = #tpu.pipeline_mode<synchronous>, transform_indices = @transform_3, window_bounds = array<i64: 2, 128>}, {transform_indices = @transform_4, window_bounds = array<i64: 32, 384>}]} {
    %c0_i32 = arith.constant 0 : i32
    %0 = arith.cmpi eq, %arg1, %c0_i32 : i32
    %1 = arith.extui %0 : i1 to i32
    %c0_i32_0 = arith.constant 0 : i32
    %2 = arith.cmpi ne, %1, %c0_i32_0 : i32
    scf.if %2 {
      %c0_8 = arith.constant 0 : index
      %c0_9 = arith.constant 0 : index
      %11 = vector.load %arg2[%c0_8, %c0_9] : memref<32x128xf32, #tpu.memory_space<vmem>>, vector<32x128xf32>
      %c0_10 = arith.constant 0 : index
      %c0_11 = arith.constant 0 : index
      %12 = vector.load %arg5[%c0_10, %c0_11] : memref<2x128xf32, #tpu.memory_space<vmem>>, vector<1x128xf32>
      %c1 = arith.constant 1 : index
      %c0_12 = arith.constant 0 : index
      %13 = vector.load %arg5[%c1, %c0_12] : memref<2x128xf32, #tpu.memory_space<vmem>>, vector<1x128xf32>
      %cst_13 = arith.constant dense<0.000000e+00> : vector<32xf32>
      %14 = vector.multi_reduction <add>, %11, %cst_13 [1] : vector<32x128xf32> to vector<32xf32>
      %15 = vector.shape_cast %14 : vector<32xf32> to vector<32x1xf32>
      %cst_14 = arith.constant 1.280000e+02 : f32
      %16 = vector.broadcast %cst_14 : f32 to vector<32x1xf32>
      %17 = arith.divf %15, %16 : vector<32x1xf32>
      %18 = vector.broadcast %17 : vector<32x1xf32> to vector<32x128xf32>
      %19 = arith.subf %11, %18 : vector<32x128xf32>
      %20 = arith.mulf %19, %19 : vector<32x128xf32>
      %cst_15 = arith.constant dense<0.000000e+00> : vector<32xf32>
      %21 = vector.multi_reduction <add>, %20, %cst_15 [1] : vector<32x128xf32> to vector<32xf32>
      %22 = vector.shape_cast %21 : vector<32xf32> to vector<32x1xf32>
      %cst_16 = arith.constant 1.280000e+02 : f32
      %23 = vector.broadcast %cst_16 : f32 to vector<32x1xf32>
      %24 = arith.divf %22, %23 : vector<32x1xf32>
      %25 = vector.broadcast %17 : vector<32x1xf32> to vector<32x128xf32>
      %26 = arith.subf %11, %25 : vector<32x128xf32>
      %cst_17 = arith.constant 9.99999996E-13 : f32
      %27 = vector.broadcast %cst_17 : f32 to vector<32x1xf32>
      %28 = arith.addf %24, %27 : vector<32x1xf32>
      %29 = math.rsqrt %28 : vector<32x1xf32>
      %30 = vector.broadcast %29 : vector<32x1xf32> to vector<32x128xf32>
      %31 = arith.mulf %26, %30 : vector<32x128xf32>
      %32 = vector.broadcast %12 : vector<1x128xf32> to vector<32x128xf32>
      %33 = arith.mulf %31, %32 : vector<32x128xf32>
      %34 = vector.broadcast %13 : vector<1x128xf32> to vector<32x128xf32>
      %35 = arith.addf %33, %34 : vector<32x128xf32>
      %36 = arith.truncf %35 : vector<32x128xf32> to vector<32x128xbf16>
      %c0_18 = arith.constant 0 : index
      %c0_19 = arith.constant 0 : index
      %37 = vector.load %arg7[%c0_18, %c0_19] : memref<32x128xbf16, #tpu.memory_space<vmem>>, vector<32x128xbf16>
      tpu.vector_store %arg7[%c0_18, %c0_19], %36 {strides = array<i32>} : memref<32x128xbf16, #tpu.memory_space<vmem>>, vector<32x128xbf16>,
    } else {
    }
    %c0 = arith.constant 0 : index
    %c0_1 = arith.constant 0 : index
    %3 = vector.load %arg7[%c0, %c0_1] : memref<32x128xbf16, #tpu.memory_space<vmem>>, vector<32x128xbf16>
    %c0_2 = arith.constant 0 : index
    %c0_3 = arith.constant 0 : index
    %4 = vector.load %arg3[%c0_2, %c0_3] : memref<128x384xbf16, #tpu.memory_space<vmem>>, vector<128x384xbf16>
    %cst = arith.constant dense<0.000000e+00> : vector<32x384xf32>
    %5 = tpu.matmul %3, %4, %cst {dimension_numbers = #tpu.dot_dimension_numbers<[1], [0], [0], [1], [0, 0, 1, 1], [], []>} : vector<32x128xbf16>, vector<128x384xbf16>, vector<32x384xf32> -> vector<32x384xf32>
    %c0_4 = arith.constant 0 : index
    %c0_5 = arith.constant 0 : index
    %6 = vector.load %arg4[%c0_4, %c0_5] : memref<1x384xf32, #tpu.memory_space<vmem>>, vector<1x384xf32>
    %7 = vector.broadcast %6 : vector<1x384xf32> to vector<32x384xf32>
    %8 = arith.addf %5, %7 : vector<32x384xf32>
    %9 = arith.truncf %8 : vector<32x384xf32> to vector<32x384xbf16>
    %c0_6 = arith.constant 0 : index
    %c0_7 = arith.constant 0 : index
    %10 = vector.load %arg6[%c0_6, %c0_7] : memref<32x384xbf16, #tpu.memory_space<vmem>>, vector<32x384xbf16>
    tpu.vector_store %arg6[%c0_6, %c0_7], %9 {strides = array<i32>} : memref<32x384xbf16, #tpu.memory_space<vmem>>, vector<32x384xbf16>,
    return
  }
  func.func @transform_0(%arg0: i32, %arg1: i32) -> (i32, i32) {
    %c0_i32 = arith.constant 0 : i32
    %c0_i32_0 = arith.constant 0 : i32
    return %arg0, %c0_i32 : i32, i32
  }
  func.func @transform_1(%arg0: i32, %arg1: i32) -> (i32, i32) {
    %c0_i32 = arith.constant 0 : i32
    %c0_i32_0 = arith.constant 0 : i32
    return %c0_i32, %arg1 : i32, i32
  }
  func.func @transform_2(%arg0: i32, %arg1: i32) -> (i32, i32) {
    %c0_i32 = arith.constant 0 : i32
    %c0_i32_0 = arith.constant 0 : i32
    return %c0_i32, %arg1 : i32, i32
  }
  func.func @transform_3(%arg0: i32, %arg1: i32) -> (i32, i32) {
    %c0_i32 = arith.constant 0 : i32
    %c0_i32_0 = arith.constant 0 : i32
    %c0_i32_1 = arith.constant 0 : i32
    return %c0_i32, %c0_i32_0 : i32, i32
  }
  func.func @transform_4(%arg0: i32, %arg1: i32) -> (i32, i32) {
    %c0_i32 = arith.constant 0 : i32
    return %arg0, %arg1 : i32, i32
  }
}

</mosaic_0001>

<llo_original>
// kernel: tpu_custom_call.1
$region0: #{tpu_custom_call.1}
  #allocation0 [shape = 'u32[]', space=smem, size = 0x4, offset = 0x4, fixed_abs, tag = 'smem constant byte address 0x4 - core index']
  #allocation1 [shape = 'u32[72,128]{1,0:T(1,128)}', space=vmem, size = 0x9000, scoped, tag = 'internal scratch']
  #allocation2 [shape = 'bf16[32,128]{1,0:T(8,128)(2,1)}', space=vmem, size = 0x2000, scoped, tag = 'scratch operand']
  %s0 = inlined_call_operand.hbm [shape: f32[128,128], index: 0, kind: input, shape index: {}]
  %s1 = inlined_call_operand.hbm [shape: bf16[128,384], index: 1, kind: input, shape index: {}]
  %s2 = inlined_call_operand.hbm [shape: f32[1,384], index: 2, kind: input, shape index: {}]
  %s3 = inlined_call_operand.vmem [shape: f32[2,128], index: 3, kind: input, shape index: {}]
  %s4 = inlined_call_operand.hbm [shape: bf16[128,384], index: 4, kind: output, shape index: {}]
  %s5 = sld [smem:[#allocation0]]
  $region65: #{tpu_custom_call.1} parent=0
    _
  %s7 = ssub.s32 1, %s5
  %s8 = scalar_select 0, %s7, %s5
  $region1: #{tpu_custom_call.1} parent=0
    #allocation3 [shape = 'u8[32768]{0}', space=vmem, size = 0x8000, scoped, tag = 'input window, operand 0']
    #allocation4 [shape = 's32[2]{0}', space=sflag, size = 0x8, scoped, tag = 'scoped memory for tpu_custom_call.1']
    #allocation5 [shape = 's32[2]{0}', space=sflag, size = 0x8, scoped, tag = 'scoped memory for tpu_custom_call.1']
    #allocation6 [shape = 'u8[98304]{0}', space=vmem, size = 0x18000, scoped, tag = 'input window, operand 1, single buffered']
    #allocation7 [shape = 's32[1]{0}', space=sflag, size = 0x4, scoped, tag = 'scoped memory for tpu_custom_call.1']
    #allocation8 [shape = 'u8[1536]{0}', space=vmem, size = 0x800, scoped, tag = 'input window, operand 2, single buffered']
    #allocation9 [shape = 'u8[49152]{0}', space=vmem, size = 0xc000, scoped, tag = 'output window, operand 0']
    %9 = vsyncpa [#allocation4], 0
    %s10 = scalar_lea.sflag [#allocation4], 1
    %11 = vsyncpa %s10, 0
    %12 = vsyncpa [#allocation7], 0
    %13 = vsyncpa [#allocation5], 0
    %s14 = scalar_lea.sflag [#allocation5], 1
    %15 = vsyncpa %s14, 0
    loop: start=0, step=1, limit=6
    $region2: #{tpu_custom_call.1} parent=1 // loop_pre_header
      _
    $region3: #{tpu_custom_call.1} parent=1 // loop_header
      %s17 = sphi 0, %s21
      %p18 = scmp.ge.s32.totalorder %s17, 6
      %s24 = sphi 0, %s36
      %s25 = sphi 0, %s32
      %s26 = sphi 0, %s24
      %s27 = sphi 0, %s25
      %s28 = sphi 0, %s26
      %s29 = sphi 0, %s27
      %s39 = sphi 0, %s41
      %s42 = sphi 0, %s39
      %s43 = sphi 0, %s42
      %s59 = sphi 0, %s43
      %s65 = sphi 0, %s67
      %s68 = sphi 0, %s65
      %s69 = sphi 0, %s68
      %s85 = sphi 0, %s69
      %s91 = sphi 0, %s93
      %s94 = sphi 0, %s91
      %s95 = sphi 0, %s94
      %s111 = sphi 0, %s95
      %s115 = sphi 0, %s115
      %s117 = sphi 0, %s115
      %s118 = sphi 0, %s117
      %s132 = sphi 0, %s118
      %s140 = sphi 0, %s142
      %s143 = sphi 0, %s140
      %s144 = sphi 0, %s143
      %s160 = sphi 0, %s144
    $region4: #{tpu_custom_call.1} parent=1 // loop_header_branch
      %20 = sbr.rel (%p18) target = $region8
    $region5: #{tpu_custom_call.1} parent=1 // loop_body
      %s22 = ssub.s32 %s17, 1
      %s23 = ssub.s32 %s17, 2
      %s30 = sadd.s32 1, %s25
      %p31 = scmp.ge.s32.totalorder %s30, 1
      %s32 = scalar_select %p31, 0, %s30
      %s33 = sadd.s32 1, %s24
      %s34 = scalar_select %p31, %s33, %s24
      %p35 = scmp.ge.s32.totalorder %s34, 4
      %s36 = scalar_select %p35, 0, %s34
      %s37 = ssub.s32 %s24, %s36
      %p38 = scmp.eq.s32.totalorder %s37, 0
      %s40 = sadd.s32 %s39, 1
      %s41 = scalar_select %p38, %s39, %s40
      %p44 = pneg %p38
      %p45 = scmp.eq.s32.totalorder %s17, 3
      %p46 = por %p44, %p45
      %p47 = scmp.ne.s32.totalorder %s39, %s42
      %p48 = scmp.eq.s32.totalorder %s17, 0
      %p49 = por %p47, %p48
      %p50 = scmp.ne.s32.totalorder %s39, %s42
      %p51 = scmp.eq.s32.totalorder %s22, 3
      %p52 = por %p50, %p51
      %p53 = scmp.ne.s32.totalorder %s42, %s43
      %p54 = scmp.eq.s32.totalorder %s22, 0
      %p55 = por %p53, %p54
      %p56 = scmp.ne.s32.totalorder %s42, %s43
      %p57 = scmp.eq.s32.totalorder %s23, 3
      %p58 = por %p56, %p57
      %p60 = scmp.ne.s32.totalorder %s43, %s59
      %p61 = scmp.eq.s32.totalorder %s23, 0
      %p62 = por %p60, %p61
      %s63 = ssub.s32 %s25, %s32
      %p64 = scmp.eq.s32.totalorder %s63, 0
      %s66 = sadd.s32 %s65, 1
      %s67 = scalar_select %p64, %s65, %s66
      %p70 = pneg %p64
      %p71 = scmp.eq.s32.totalorder %s17, 3
      %p72 = por %p70, %p71
      %p73 = scmp.ne.s32.totalorder %s65, %s68
      %p74 = scmp.eq.s32.totalorder %s17, 0
      %p75 = por %p73, %p74
      %p76 = scmp.ne.s32.totalorder %s65, %s68
      %p77 = scmp.eq.s32.totalorder %s22, 3
      %p78 = por %p76, %p77
      %p79 = scmp.ne.s32.totalorder %s68, %s69
      %p80 = scmp.eq.s32.totalorder %s22, 0
      %p81 = por %p79, %p80
      %p82 = scmp.ne.s32.totalorder %s68, %s69
      %p83 = scmp.eq.s32.totalorder %s23, 3
      %p84 = por %p82, %p83
      %p86 = scmp.ne.s32.totalorder %s69, %s85
      %p87 = scmp.eq.s32.totalorder %s23, 0
      %p88 = por %p86, %p87
      %s89 = ssub.s32 %s25, %s32
      %p90 = scmp.eq.s32.totalorder %s89, 0
      %s92 = sadd.s32 %s91, 1
      %s93 = scalar_select %p90, %s91, %s92
      %p96 = pneg %p90
      %p97 = scmp.eq.s32.totalorder %s17, 3
      %p98 = por %p96, %p97
      %p99 = scmp.ne.s32.totalorder %s91, %s94
      %p100 = scmp.eq.s32.totalorder %s17, 0
      %p101 = por %p99, %p100
      %p102 = scmp.ne.s32.totalorder %s91, %s94
      %p103 = scmp.eq.s32.totalorder %s22, 3
      %p104 = por %p102, %p103
      %p105 = scmp.ne.s32.totalorder %s94, %s95
      %p106 = scmp.eq.s32.totalorder %s22, 0
      %p107 = por %p105, %p106
      %p108 = scmp.ne.s32.totalorder %s94, %s95
      %p109 = scmp.eq.s32.totalorder %s23, 3
      %p110 = por %p108, %p109
      %p112 = scmp.ne.s32.totalorder %s95, %s111
      %p113 = scmp.eq.s32.totalorder %s23, 0
      %p114 = por %p112, %p113
      %s116 = sadd.s32 %s115, 1
      %p119 = scmp.eq.s32.totalorder %s17, 3
      %p120 = scmp.ne.s32.totalorder %s115, %s117
      %p121 = scmp.eq.s32.totalorder %s17, 0
      %p122 = por %p120, %p121
      %p123 = scmp.ne.s32.totalorder %s115, %s117
      %p124 = scmp.eq.s32.totalorder %s22, 3
      %p125 = por %p123, %p124
      %p126 = scmp.ne.s32.totalorder %s117, %s118
      %p127 = scmp.eq.s32.totalorder %s22, 0
      %p128 = por %p126, %p127
      %p129 = scmp.ne.s32.totalorder %s117, %s118
      %p130 = scmp.eq.s32.totalorder %s23, 3
      %p131 = por %p129, %p130
      %p133 = scmp.ne.s32.totalorder %s118, %s132
      %p134 = scmp.eq.s32.totalorder %s23, 0
      %p135 = por %p133, %p134
      %s136 = ssub.s32 %s24, %s36
      %s137 = ssub.s32 %s25, %s32
      %s138 = sor.u32 %s136, %s137
      %p139 = scmp.eq.s32.totalorder %s138, 0
      %s141 = sadd.s32 %s140, 1
      %s142 = scalar_select %p139, %s140, %s141
      %p145 = pneg %p139
      %p146 = scmp.eq.s32.totalorder %s17, 3
      %p147 = por %p145, %p146
      %p148 = scmp.ne.s32.totalorder %s140, %s143
      %p149 = scmp.eq.s32.totalorder %s17, 0
      %p150 = por %p148, %p149
      %p151 = scmp.ne.s32.totalorder %s140, %s143
      %p152 = scmp.eq.s32.totalorder %s22, 3
      %p153 = por %p151, %p152
      %p154 = scmp.ne.s32.totalorder %s143, %s144
      %p155 = scmp.eq.s32.totalorder %s22, 0
      %p156 = por %p154, %p155
      %p157 = scmp.ne.s32.totalorder %s143, %s144
      %p158 = scmp.eq.s32.totalorder %s23, 3
      %p159 = por %p157, %p158
      %p161 = scmp.ne.s32.totalorder %s144, %s160
      %p162 = scmp.eq.s32.totalorder %s23, 0
      %p163 = por %p161, %p162
      %p164 = scmp.le.s32.totalorder 1, %s17
      %p165 = scmp.lt.s32.totalorder %s17, 5
      %p166 = pnand %p164, %p165
      %p167 = pneg %p166
      // Predicated region
      $region9: #{tpu_custom_call.1} parent=5 // pred_check
        _
      $region10: #{tpu_custom_call.1} parent=5 // pred_check_branch
        %169 = sbr.rel (%p166) target = $region12
      $region11: #{tpu_custom_call.1} parent=5 // pred_region
        %s170 = ssub.s32 %s17, 1
        // Predicated region
        $region13: #{tpu_custom_call.1} parent=11 // pred_check
          %p171 = pneg %p81
        $region14: #{tpu_custom_call.1} parent=11 // pred_check_branch
          %173 = sbr.rel (%p171) target = $region16
        $region15: #{tpu_custom_call.1} parent=11 // pred_region
          %s174 = smul.u32 3, %s27
          %176 = vsyncadd [#allocation7], 0
          %s177 = smul.addr %s174, 4
          %s178 = scalar_lea.hbm %s1, %s177
          %s179 = sshll.u32 %s178, 4
          %s180 = int_to_ptr.hbm [resolvable:$true] %s179
          %s181 = sshll.u32 [#allocation6], 4
          %s182 = int_to_ptr.vmem [resolvable:$true] %s181
          %187 = dma.hbm_to_vmem [thread:$0]  %s180, 3072, %s182, [#allocation7], 192, 192, 12
        $region16: #{tpu_custom_call.1} parent=11 // pred_fallthru
          _
        // Predicated region
        $region17: #{tpu_custom_call.1} parent=11 // pred_check
          %p188 = pneg %p107
        $region18: #{tpu_custom_call.1} parent=11 // pred_check_branch
          %190 = sbr.rel (%p188) target = $region20
        $region19: #{tpu_custom_call.1} parent=11 // pred_region
          %s191 = smul.u32 3, %s27
          %193 = vsyncadd [#allocation7], 0
          %s194 = scalar_lea.hbm %s2, %s191
          %s196 = sshll.u32 %s194, 4
          %s197 = int_to_ptr.hbm [resolvable:$true] %s196
          %s198 = sshll.u32 [#allocation8], 4
          %s199 = int_to_ptr.vmem [resolvable:$true] %s198
          %201 = dma.hbm_to_vmem [thread:$0]  %s197, 48, %s199, [#allocation7]
        $region20: #{tpu_custom_call.1} parent=11 // pred_fallthru
          _
        // Predicated region
        $region21: #{tpu_custom_call.1} parent=11 // pred_check
          %p202 = pneg %p128
        $region22: #{tpu_custom_call.1} parent=11 // pred_check_branch
          %204 = sbr.rel (%p202) target = $region24
        $region23: #{tpu_custom_call.1} parent=11 // pred_region
          _
        $region24: #{tpu_custom_call.1} parent=11 // pred_fallthru
          _
      $region12: #{tpu_custom_call.1} parent=5 // pred_fallthru
        _
      %p205 = scmp.lt.s32.totalorder %s17, 4
      // Predicated region
      $region25: #{tpu_custom_call.1} parent=5 // pred_check
        %p206 = pneg %p205
      $region26: #{tpu_custom_call.1} parent=5 // pred_check_branch
        %208 = sbr.rel (%p206) target = $region28
      $region27: #{tpu_custom_call.1} parent=5 // pred_region
        // Predicated region
        $region29: #{tpu_custom_call.1} parent=27 // pred_check
          %p209 = pneg %p49
        $region30: #{tpu_custom_call.1} parent=27 // pred_check_branch
          %211 = sbr.rel (%p209) target = $region32
        $region31: #{tpu_custom_call.1} parent=27 // pred_region
          %s212 = sand.u32 %s39, 1
          %s213 = scalar_lea.sflag [#allocation4], %s212
          %s214 = sand.u32 %s39, 1
          %s215 = smul.addr %s214, 32
          %s216 = scalar_lea.vmem [#allocation3], %s215
          %s217 = smul.u32 4, %s24
          %219 = vsyncadd %s213, 0
          %s220 = smul.addr %s217, 8
          %s221 = scalar_lea.hbm %s0, %s220
          %s222 = sshll.u32 %s221, 4
          %s223 = int_to_ptr.hbm [resolvable:$true] %s222
          %s224 = sshll.u32 %s216, 4
          %s225 = int_to_ptr.vmem [resolvable:$true] %s224
          %230 = dma.hbm_to_vmem [thread:$0]  %s223, 512, %s225, %s213, 128, 128, 8
        $region32: #{tpu_custom_call.1} parent=27 // pred_fallthru
          _
      $region28: #{tpu_custom_call.1} parent=5 // pred_fallthru
        _
      %p231 = scmp.le.s32.totalorder 1, %s17
      %p232 = scmp.lt.s32.totalorder %s17, 5
      %p233 = pnand %p231, %p232
      %p234 = pneg %p233
      // Predicated region
      $region33: #{tpu_custom_call.1} parent=5 // pred_check
        _
      $region34: #{tpu_custom_call.1} parent=5 // pred_check_branch
        %236 = sbr.rel (%p233) target = $region36
      $region35: #{tpu_custom_call.1} parent=5 // pred_region
        %s237 = ssub.s32 %s17, 1
        %s238 = sand.u32 %s42, 1
        %s239 = scalar_lea.sflag [#allocation4], %s238
        %s240 = sand.u32 %s42, 1
        %s241 = smul.addr %s240, 32
        %s242 = scalar_lea.vmem [#allocation3], %s241
        // Predicated region
        $region37: #{tpu_custom_call.1} parent=35 // pred_check
          %p243 = pneg %p55
        $region38: #{tpu_custom_call.1} parent=35 // pred_check_branch
          %245 = sbr.rel (%p243) target = $region40
        $region39: #{tpu_custom_call.1} parent=35 // pred_region
          %247 = dma.done %s239, 512
        $region40: #{tpu_custom_call.1} parent=35 // pred_fallthru
          _
        // Predicated region
        $region41: #{tpu_custom_call.1} parent=35 // pred_check
          %p248 = pneg %p81
        $region42: #{tpu_custom_call.1} parent=35 // pred_check_branch
          %250 = sbr.rel (%p248) target = $region44
        $region43: #{tpu_custom_call.1} parent=35 // pred_region
          %252 = dma.done [#allocation7], 3072
        $region44: #{tpu_custom_call.1} parent=35 // pred_fallthru
          _
        // Predicated region
        $region45: #{tpu_custom_call.1} parent=35 // pred_check
          %p253 = pneg %p107
        $region46: #{tpu_custom_call.1} parent=35 // pred_check_branch
          %255 = sbr.rel (%p253) target = $region48
        $region47: #{tpu_custom_call.1} parent=35 // pred_region
          %257 = dma.done [#allocation7], 48
        $region48: #{tpu_custom_call.1} parent=35 // pred_fallthru
          _
        %s258 = sand.u32 %s42, 1
        %s259 = scalar_lea.sflag [#allocation4], %s258
        %s260 = sand.u32 %s42, 1
        %s261 = smul.addr %s260, 32
        %s262 = scalar_lea.vmem [#allocation3], %s261
        %p263 = pneg %p55
        %p264 = pneg %p52
        %p265 = pneg %p81
        %p266 = pneg %p78
        %p267 = pneg %p107
        %p268 = pneg %p104
        %p269 = pneg %p128
        %p270 = pneg %p125
        %p271 = pneg %p156
        %p272 = pneg %p153
        %s273 = sand.u32 %s143, 1
        %s274 = scalar_lea.sflag [#allocation5], %s273
        %s275 = sand.u32 %s143, 1
        %s276 = smul.addr %s275, 48
        %s277 = scalar_lea.vmem [#allocation9], %s276
        %s278 = smul.u32 4, %s26
        %s279 = smul.u32 3, %s27
        %s280 = smul.u32 3, %s27
        %s281 = smul.u32 4, %s26
        %s282 = smul.u32 3, %s27
        %p283 = scmp.eq.s32.totalorder %s27, 0
        // Predicated region
        $region49: #{tpu_custom_call.1} parent=35 // pred_check
          %p284 = pneg %p283
        $region50: #{tpu_custom_call.1} parent=35 // pred_check_branch
          %286 = sbr.rel (%p284) target = $region52
        $region51: #{tpu_custom_call.1} parent=35 // pred_region
          %v287 = vld [vmem:[%s242] sm:$0xff]
          %v288 = vld [vmem:[%s242 + $0x8] sm:$0xff]
          %v289 = vld [vmem:[%s242 + $0x10] sm:$0xff]
          %v290 = vld [vmem:[%s242 + $0x18] sm:$0xff]
          %v291 = vld [vmem:[%s3] sm:$0x1]
          %v292 = vld [vmem:[%s3 + $0x1] sm:$0x1]
          %293 = vadd.xlane.f32.xlu0 %v287
          %v294 = vpop.xlane.xlu0 %293
          %295 = vadd.xlane.f32.xlu0 %v288
          %v296 = vpop.xlane.xlu0 %295
          %297 = vadd.xlane.f32.xlu0 %v289
          %v298 = vpop.xlane.xlu0 %297
          %299 = vadd.xlane.f32.xlu0 %v290
          %v300 = vpop.xlane.xlu0 %299
          %v301 = vrcp.pop 128.0
          %v302 = vmul.f32 128.0, %v301
          %v303 = vsub.f32 1.0, %v302
          %v304 = vmul.f32 %v301, %v303
          %v305 = vadd.f32 %v301, %v304
          %vm306 = vweird.f32 %v301
          %v307 = vsel %vm306, %v301, %v305
          %v308 = vmul.f32 %v294, %v307
          %v309 = vmul.f32 %v296, %v307
          %v310 = vmul.f32 %v298, %v307
          %v311 = vmul.f32 %v300, %v307
          %v312 = vsub.f32 %v287, %v308
          %v313 = vsub.f32 %v288, %v309
          %v314 = vsub.f32 %v289, %v310
          %v315 = vsub.f32 %v290, %v311
          %v316 = vmul.f32 %v312, %v312
          %v317 = vmul.f32 %v313, %v313
          %v318 = vmul.f32 %v314, %v314
          %v319 = vmul.f32 %v315, %v315
          %320 = vadd.xlane.f32.xlu0 %v316
          %v321 = vpop.xlane.xlu0 %320
          %322 = vadd.xlane.f32.xlu0 %v317
          %v323 = vpop.xlane.xlu0 %322
          %324 = vadd.xlane.f32.xlu0 %v318
          %v325 = vpop.xlane.xlu0 %324
          %326 = vadd.xlane.f32.xlu0 %v319
          %v327 = vpop.xlane.xlu0 %326
          %v328 = vmul.f32 %v321, %v307
          %v329 = vmul.f32 %v323, %v307
          %v330 = vmul.f32 %v325, %v307
          %v331 = vmul.f32 %v327, %v307
          %v332 = vadd.f32 %v328, 1e-12
          %v333 = vadd.f32 %v329, 1e-12
          %v334 = vadd.f32 %v330, 1e-12
          %v335 = vadd.f32 %v331, 1e-12
          %v336 = vrsqrt.pop %v332
          %v337 = vmul.f32 %v336, %v332
          %v338 = vmul.f32 %v337, %v336
          %v339 = vmul.f32 0.5, %v338
          %v340 = vsub.f32 1.5, %v339
          %v341 = vmul.f32 %v336, %v340
          %vm342 = vweird.f32 %v332
          %vm343 = vweird.f32 %v336
          %vm344 = vmor %vm342, %vm343
          %v345 = vsel %vm344, %v336, %v341
          %v346 = vrsqrt.pop %v333
          %v347 = vmul.f32 %v346, %v333
          %v348 = vmul.f32 %v347, %v346
          %v349 = vmul.f32 0.5, %v348
          %v350 = vsub.f32 1.5, %v349
          %v351 = vmul.f32 %v346, %v350
          %vm352 = vweird.f32 %v333
          %vm353 = vweird.f32 %v346
          %vm354 = vmor %vm352, %vm353
          %v355 = vsel %vm354, %v346, %v351
          %v356 = vrsqrt.pop %v334
          %v357 = vmul.f32 %v356, %v334
          %v358 = vmul.f32 %v357, %v356
          %v359 = vmul.f32 0.5, %v358
          %v360 = vsub.f32 1.5, %v359
          %v361 = vmul.f32 %v356, %v360
          %vm362 = vweird.f32 %v334
          %vm363 = vweird.f32 %v356
          %vm364 = vmor %vm362, %vm363
          %v365 = vsel %vm364, %v356, %v361
          %v366 = vrsqrt.pop %v335
          %v367 = vmul.f32 %v366, %v335
          %v368 = vmul.f32 %v367, %v366
          %v369 = vmul.f32 0.5, %v368
          %v370 = vsub.f32 1.5, %v369
          %v371 = vmul.f32 %v366, %v370
          %vm372 = vweird.f32 %v335
          %vm373 = vweird.f32 %v366
          %vm374 = vmor %vm372, %vm373
          %v375 = vsel %vm374, %v366, %v371
          %v376 = vmul.f32 %v312, %v345
          %v377 = vmul.f32 %v313, %v355
          %v378 = vmul.f32 %v314, %v365
          %v379 = vmul.f32 %v315, %v375
          %v380 = vperm.slane %v291, 0
          %v381 = vmul.f32 %v376, %v380
          %v382 = vmul.f32 %v377, %v380
          %v383 = vmul.f32 %v378, %v380
          %v384 = vmul.f32 %v379, %v380
          %v385 = vperm.slane %v292, 0
          %v386 = vadd.f32 %v381, %v385
          %v387 = vadd.f32 %v382, %v385
          %v388 = vadd.f32 %v383, %v385
          %v389 = vadd.f32 %v384, %v385
          %v390 = vpack.c.bf16 %v386, %v386
          %v391 = vpack.c.bf16 %v387, %v387
          %v392 = vpack.c.bf16 %v388, %v388
          %v393 = vpack.c.bf16 %v389, %v389
          %394 = vst [vmem:[#allocation2] sm:$0xf] %v390
          %395 = vst [vmem:[#allocation2 + $0x4] sm:$0xf] %v391
          %396 = vst [vmem:[#allocation2 + $0x8] sm:$0xf] %v392
          %397 = vst [vmem:[#allocation2 + $0xc] sm:$0xf] %v393
        $region52: #{tpu_custom_call.1} parent=35 // pred_fallthru
          _
        %v398 = vld [vmem:[#allocation2] sm:$0xf]
        %v399 = vld [vmem:[#allocation2 + $0x4] sm:$0xf]
        %v400 = vld [vmem:[#allocation2 + $0x8] sm:$0xf]
        %v401 = vld [vmem:[#allocation2 + $0xc] sm:$0xf]
        %v402 = vld [vmem:[#allocation6] sm:$0xff]
        %v403 = vld [vmem:[#allocation6 + $0x8] sm:$0xf]
        %v404 = vld [vmem:[#allocation6 + $0xc] sm:$0xff]
        %v405 = vld [vmem:[#allocation6 + $0x14] sm:$0xf]
        %v406 = vld [vmem:[#allocation6 + $0x18] sm:$0xff]
        %v407 = vld [vmem:[#allocation6 + $0x20] sm:$0xf]
        %v408 = vld [vmem:[#allocation6 + $0x24] sm:$0xff]
        %v409 = vld [vmem:[#allocation6 + $0x2c] sm:$0xf]
        %v410 = vld [vmem:[#allocation6 + $0x30] sm:$0xff]
        %v411 = vld [vmem:[#allocation6 + $0x38] sm:$0xf]
        %v412 = vld [vmem:[#allocation6 + $0x3c] sm:$0xff]
        %v413 = vld [vmem:[#allocation6 + $0x44] sm:$0xf]
        %v414 = vld [vmem:[#allocation6 + $0x48] sm:$0xff]
        %v415 = vld [vmem:[#allocation6 + $0x50] sm:$0xf]
        %v416 = vld [vmem:[#allocation6 + $0x54] sm:$0xff]
        %v417 = vld [vmem:[#allocation6 + $0x5c] sm:$0xf]
        %v418 = vld [vmem:[#allocation6 + $0x60] sm:$0xff]
        %v419 = vld [vmem:[#allocation6 + $0x68] sm:$0xf]
        %v420 = vld [vmem:[#allocation6 + $0x6c] sm:$0xff]
        %v421 = vld [vmem:[#allocation6 + $0x74] sm:$0xf]
        %v422 = vld [vmem:[#allocation6 + $0x78] sm:$0xff]
        %v423 = vld [vmem:[#allocation6 + $0x80] sm:$0xf]
        %v424 = vld [vmem:[#allocation6 + $0x84] sm:$0xff]
        %v425 = vld [vmem:[#allocation6 + $0x8c] sm:$0xf]
        %v426 = vld [vmem:[#allocation6 + $0x90] sm:$0xff]
        %v427 = vld [vmem:[#allocation6 + $0x98] sm:$0xf]
        %v428 = vld [vmem:[#allocation6 + $0x9c] sm:$0xff]
        %v429 = vld [vmem:[#allocation6 + $0xa4] sm:$0xf]
        %v430 = vld [vmem:[#allocation6 + $0xa8] sm:$0xff]
        %v431 = vld [vmem:[#allocation6 + $0xb0] sm:$0xf]
        %v432 = vld [vmem:[#allocation6 + $0xb4] sm:$0xff]
        %v433 = vld [vmem:[#allocation6 + $0xbc] sm:$0xf]
        %v434 = vld [vmem:[#allocation8] sm:$0x7]
        %v436 = vperm.slane %v434, 0
        %v437 = vperm.slane %v434, 1
        %v438 = vperm.slane %v434, 2
        %v446 = vunpack.c.l.b16 %v398
        %v447 = vunpack.c.l.b16 %v399
        %v448 = vunpack.c.l.b16 %v400
        %v449 = vunpack.c.l.b16 %v401
        %v450 = vpack.c.b16 %v447, %v446
        %v451 = vpack.c.b16 %v449, %v448
        %v486 = vunpack.c.l.b16 %v402
        %v487 = vunpack.c.h.b16 %v402
        %v488 = vunpack.c.l.b16 %v403
        %v489 = vunpack.c.l.b16 %v404
        %v490 = vunpack.c.h.b16 %v404
        %v491 = vunpack.c.l.b16 %v405
        %v492 = vunpack.c.l.b16 %v406
        %v493 = vunpack.c.h.b16 %v406
        %v494 = vunpack.c.l.b16 %v407
        %v495 = vunpack.c.l.b16 %v408
        %v496 = vunpack.c.h.b16 %v408
        %v497 = vunpack.c.l.b16 %v409
        %v498 = vunpack.c.l.b16 %v410
        %v499 = vunpack.c.h.b16 %v410
        %v500 = vunpack.c.l.b16 %v411
        %v501 = vunpack.c.l.b16 %v412
        %v502 = vunpack.c.h.b16 %v412
        %v503 = vunpack.c.l.b16 %v413
        %v504 = vunpack.c.l.b16 %v414
        %v505 = vunpack.c.h.b16 %v414
        %v506 = vunpack.c.l.b16 %v415
        %v507 = vunpack.c.l.b16 %v416
        %v508 = vunpack.c.h.b16 %v416
        %v509 = vunpack.c.l.b16 %v417
        %v510 = vunpack.c.l.b16 %v418
        %v511 = vunpack.c.h.b16 %v418
        %v512 = vunpack.c.l.b16 %v419
        %v513 = vunpack.c.l.b16 %v420
        %v514 = vunpack.c.h.b16 %v420
        %v515 = vunpack.c.l.b16 %v421
        %v516 = vunpack.c.l.b16 %v422
        %v517 = vunpack.c.h.b16 %v422
        %v518 = vunpack.c.l.b16 %v423
        %v519 = vunpack.c.l.b16 %v424
        %v520 = vunpack.c.h.b16 %v424
        %v521 = vunpack.c.l.b16 %v425
        %v522 = vunpack.c.l.b16 %v426
        %v523 = vunpack.c.h.b16 %v426
        %v524 = vunpack.c.l.b16 %v427
        %v525 = vunpack.c.l.b16 %v428
        %v526 = vunpack.c.h.b16 %v428
        %v527 = vunpack.c.l.b16 %v429
        %v528 = vunpack.c.l.b16 %v430
        %v529 = vunpack.c.h.b16 %v430
        %v530 = vunpack.c.l.b16 %v431
        %v531 = vunpack.c.l.b16 %v432
        %v532 = vunpack.c.h.b16 %v432
        %v533 = vunpack.c.l.b16 %v433
        %v534 = vpack.c.b16 %v489, %v486
        %v535 = vpack.c.b16 %v490, %v487
        %v536 = vpack.c.b16 %v491, %v488
        %v537 = vpack.c.b16 %v495, %v492
        %v538 = vpack.c.b16 %v496, %v493
        %v539 = vpack.c.b16 %v497, %v494
        %v540 = vpack.c.b16 %v501, %v498
        %v541 = vpack.c.b16 %v502, %v499
        %v542 = vpack.c.b16 %v503, %v500
        %v543 = vpack.c.b16 %v507, %v504
        %v544 = vpack.c.b16 %v508, %v505
        %v545 = vpack.c.b16 %v509, %v506
        %v546 = vpack.c.b16 %v513, %v510
        %v547 = vpack.c.b16 %v514, %v511
        %v548 = vpack.c.b16 %v515, %v512
        %v549 = vpack.c.b16 %v519, %v516
        %v550 = vpack.c.b16 %v520, %v517
        %v551 = vpack.c.b16 %v521, %v518
        %v552 = vpack.c.b16 %v525, %v522
        %v553 = vpack.c.b16 %v526, %v523
        %v554 = vpack.c.b16 %v527, %v524
        %v555 = vpack.c.b16 %v531, %v528
        %v556 = vpack.c.b16 %v532, %v529
        %v557 = vpack.c.b16 %v533, %v530
        %582 = vmatpush.bf16.msra.mxu0 %v555
        %583 = vmatpush.bf16.msra.mxu0 %v552
        %584 = vmatpush.bf16.msra.mxu0 %v549
        %585 = vmatpush.bf16.msra.mxu0 %v546
        %586 = vmatpush.bf16.msra.mxu0 %v543
        %587 = vmatpush.bf16.msra.mxu0 %v540
        %588 = vmatpush.bf16.msra.mxu0 %v537
        %589 = vmatpush.bf16.msra.mxu0 %v534
        %590 = vmatmul.bf16.gmra.mxu0 %v450
        %v591 = vpop.f32.mrf.mxu0
        %v592 = vadd.f32 %v436, %v591
        %v593 = vpop.f32.mrf.mxu0
        %v594 = vadd.f32 %v436, %v593
        %595 = vmatmul.bf16.gmra.mxu0 %v451
        %v596 = vpop.f32.mrf.mxu0
        %v597 = vadd.f32 %v436, %v596
        %v598 = vpop.f32.mrf.mxu0
        %v599 = vadd.f32 %v436, %v598
        %600 = vdwg.mxu0
        %601 = vmatpush.bf16.msra.mxu0 %v556
        %602 = vmatpush.bf16.msra.mxu0 %v553
        %603 = vmatpush.bf16.msra.mxu0 %v550
        %604 = vmatpush.bf16.msra.mxu0 %v547
        %605 = vmatpush.bf16.msra.mxu0 %v544
        %606 = vmatpush.bf16.msra.mxu0 %v541
        %607 = vmatpush.bf16.msra.mxu0 %v538
        %608 = vmatpush.bf16.msra.mxu0 %v535
        %609 = vmatmul.bf16.gmra.mxu0 %v450
        %v610 = vpop.f32.mrf.mxu0
        %v611 = vadd.f32 %v437, %v610
        %v612 = vpop.f32.mrf.mxu0
        %v613 = vadd.f32 %v437, %v612
        %614 = vmatmul.bf16.gmra.mxu0 %v451
        %v615 = vpop.f32.mrf.mxu0
        %v616 = vadd.f32 %v437, %v615
        %v617 = vpop.f32.mrf.mxu0
        %v618 = vadd.f32 %v437, %v617
        %619 = vdwg.mxu0
        %620 = vmatpush.bf16.msra.mxu0 %v557
        %621 = vmatpush.bf16.msra.mxu0 %v554
        %622 = vmatpush.bf16.msra.mxu0 %v551
        %623 = vmatpush.bf16.msra.mxu0 %v548
        %624 = vmatpush.bf16.msra.mxu0 %v545
        %625 = vmatpush.bf16.msra.mxu0 %v542
        %626 = vmatpush.bf16.msra.mxu0 %v539
        %627 = vmatpush.bf16.msra.mxu0 %v536
        %628 = vmatmul.bf16.gmra.mxu0 %v450
        %v629 = vpop.f32.mrf.mxu0
        %v630 = vadd.f32 %v438, %v629
        %v631 = vpop.f32.mrf.mxu0
        %v632 = vadd.f32 %v438, %v631
        %633 = vmatmul.bf16.gmra.mxu0 %v451
        %v634 = vpop.f32.mrf.mxu0
        %v635 = vadd.f32 %v438, %v634
        %v636 = vpop.f32.mrf.mxu0
        %v637 = vadd.f32 %v438, %v636
        %638 = vdwg.mxu0
        %v639 = vpack.c.bf16 %v611, %v592
        %v640 = vpack.c.bf16 %v630, %v630
        %v641 = vpack.c.bf16 %v613, %v594
        %v642 = vpack.c.bf16 %v632, %v632
        %v643 = vpack.c.bf16 %v616, %v597
        %v644 = vpack.c.bf16 %v635, %v635
        %v645 = vpack.c.bf16 %v618, %v599
        %v646 = vpack.c.bf16 %v637, %v637
        %647 = vst [vmem:[%s277] sm:$0xff] %v639
        %648 = vst [vmem:[%s277 + $0x8] sm:$0xf] %v640
        %649 = vst [vmem:[%s277 + $0xc] sm:$0xff] %v641
        %650 = vst [vmem:[%s277 + $0x14] sm:$0xf] %v642
        %651 = vst [vmem:[%s277 + $0x18] sm:$0xff] %v643
        %652 = vst [vmem:[%s277 + $0x20] sm:$0xf] %v644
        %653 = vst [vmem:[%s277 + $0x24] sm:$0xff] %v645
        %654 = vst [vmem:[%s277 + $0x2c] sm:$0xf] %v646
        %s655 = sand.u32 %s143, 1
        %s656 = scalar_lea.sflag [#allocation5], %s655
        %s657 = sand.u32 %s143, 1
        %s658 = smul.addr %s657, 48
        %s659 = scalar_lea.vmem [#allocation9], %s658
        // Predicated region
        $region53: #{tpu_custom_call.1} parent=35 // pred_check
          %p660 = pneg %p153
        $region54: #{tpu_custom_call.1} parent=35 // pred_check_branch
          %662 = sbr.rel (%p660) target = $region56
        $region55: #{tpu_custom_call.1} parent=35 // pred_region
          %s663 = smul.u32 4, %s26
          %s664 = smul.u32 3, %s27
          %666 = vsyncadd %s656, 0
          %s667 = smul.addr %s663, 3
          %s668 = sadd.s32 %s664, %s667
          %s669 = smul.addr %s668, 4
          %s670 = scalar_lea.hbm %s4, %s669
          %s671 = sshll.u32 %s659, 4
          %s672 = int_to_ptr.vmem [resolvable:$true] %s671
          %s673 = sshll.u32 %s670, 4
          %s674 = int_to_ptr.hbm [resolvable:$true] %s673
          %679 = dma.vmem_to_hbm [thread:$0]  %s672, 768, %s674, %s656, 192, 192, 12
        $region56: #{tpu_custom_call.1} parent=35 // pred_fallthru
          _
      $region36: #{tpu_custom_call.1} parent=5 // pred_fallthru
        _
      %p680 = scmp.le.s32.totalorder 2, %s17
      // Predicated region
      $region57: #{tpu_custom_call.1} parent=5 // pred_check
        %p681 = pneg %p680
      $region58: #{tpu_custom_call.1} parent=5 // pred_check_branch
        %683 = sbr.rel (%p681) target = $region60
      $region59: #{tpu_custom_call.1} parent=5 // pred_region
        %s684 = ssub.s32 %s17, 2
        // Predicated region
        $region61: #{tpu_custom_call.1} parent=59 // pred_check
          %p685 = pneg %p159
        $region62: #{tpu_custom_call.1} parent=59 // pred_check_branch
          %687 = sbr.rel (%p685) target = $region64
        $region63: #{tpu_custom_call.1} parent=59 // pred_region
          %s688 = sand.u32 %s144, 1
          %s689 = scalar_lea.sflag [#allocation5], %s688
          %s690 = sand.u32 %s144, 1
          %s691 = smul.addr %s690, 48
          %s692 = scalar_lea.vmem [#allocation9], %s691
          %694 = dma.done %s689, 768
        $region64: #{tpu_custom_call.1} parent=59 // pred_fallthru
          _
      $region60: #{tpu_custom_call.1} parent=5 // pred_fallthru
        _
    $region6: #{tpu_custom_call.1} parent=1 // loop_footer
      %s21 = sadd.s32 1, %s17
    $region7: #{tpu_custom_call.1} parent=1 // loop_footer_branch
      %16 = sbr.rel target = $region3
    $region8: #{tpu_custom_call.1} parent=1 // loop_exit
      _
    %695 = vsyncpa [#allocation4], 1
    %s696 = scalar_lea.sflag [#allocation4], 1
    %697 = vsyncpa %s696, 1
    %698 = vsyncpa [#allocation7], 1
    %699 = vsyncpa [#allocation5], 1
    %s700 = scalar_lea.sflag [#allocation5], 1
    %701 = vsyncpa %s700, 1

</llo_original>
